<compile_context>
chip_gen: v7x
topology: tpu7x:2x2x1
jax: 0.10.0
libtpu: 0.0.40
codegen_flags: <defaults>
</compile_context>

<pallas_src>
import math

import jax
import jax.numpy as jnp
from jax import lax
from jax.experimental import pallas as pl
from jax.experimental.pallas import tpu as pltpu

_LANE = 128        # lane width: output last dim padded to a multiple of this
_TILE_MAX = 8192   # lanes per grid step when tiling large M


# --------------------------------- kernel -----------------------------------
#
# Packed VMEM input layout, packed[plane, row, :], plane 0 = real, 1 = imag:
#   rows  0:8   left  = [A1, A2, A2, A1, A2, A3, 0, 0]  (A2 in row 2 keeps the
#                                                        original module's Q3 quirk)
#   rows  8:16  mid   = [p1, p1, p1, Th, Th, Th, 0, 0]
#   rows 16:24  right = [C1, C2, C3, C1, C2, C3, 0, 0]
#   rows 24:32  bp    = [B1, B2, B3, p2, 0, 0, 0, 0]
# prod = left (x) mid (x) right (elementwise complex):
#   rows 0:3 -> Q1,Q2,Q3 diagonals ; rows 3:6 -> A*Theta*C diagonals.
# coeff = [-1,-1,-1, alpha, belta, belta, 0, 0] folds the "-Q + coeff*T" split
# into one weighted cross-sublane sum.

def theta_unfold_kernel(ab_ref, packed_ref, out_ref):
    packed = packed_ref[...]                 # (2, 32, T)
    pr = packed[0]                           # (32, T) real plane
    pi = packed[1]                           # (32, T) imag plane

    lr, li = pr[0:8, :],   pi[0:8, :]        # all group starts 8-aligned
    mr, mi = pr[8:16, :],  pi[8:16, :]
    rr, ri = pr[16:24, :], pi[16:24, :]
    br_, bi_ = pr[24:32, :], pi[24:32, :]

    # (mid * right) complex, then * left complex — one (8, T) chain on the VPU.
    mrr = mr * rr - mi * ri
    mri = mr * ri + mi * rr
    prod_r = lr * mrr - li * mri
    prod_i = lr * mri + li * mrr

    # coeff = [-1,-1,-1, alpha, belta, belta, 0, 0] as an (8, 1) column.
    alpha = ab_ref[0]
    belta = ab_ref[1]
    row = lax.broadcasted_iota(jnp.int32, (8, 1), 0)
    coeff = jnp.where(row < 3, -1.0,
                      jnp.where(row == 3, alpha,
                                jnp.where(row < 6, belta, 0.0)))

    # Single weighted reduce of the product rows + one reduce of bdiag+p2 rows.
    sum_r = (jnp.sum(coeff * prod_r, axis=0, keepdims=True)
             + jnp.sum(br_, axis=0, keepdims=True))       # (1, T)
    sum_i = (jnp.sum(coeff * prod_i, axis=0, keepdims=True)
             + jnp.sum(bi_, axis=0, keepdims=True))

    # x = b / ||b||  (per-column complex normalization == torch.norm of [2,1]).
    inv_norm = lax.rsqrt(sum_r * sum_r + sum_i * sum_i)    # EUP, few-ULP vs ref
    out_ref[...] = jnp.concatenate([sum_r, sum_i], axis=0) * inv_norm  # 1 store


# -------------------------------- wrappers ------------------------------------

def _round_up(x, m):
    return ((x + m - 1) // m) * m


def theta_unfold_diag(th, a1, b1, c1, a2, b2, c2, a3, b3, c3,
                      alpha, belta, p1, p2):
    """Diagonal-in / diagonal-out path: every array input is (2, M)."""
    f32 = jnp.float32
    M = p1.shape[-1]

    th, a1, b1, c1 = (x.astype(f32) for x in (th, a1, b1, c1))
    a2, b2, c2 = (x.astype(f32) for x in (a2, b2, c2))
    a3, b3, c3 = (x.astype(f32) for x in (a3, b3, c3))
    p1, p2 = p1.astype(f32), p2.astype(f32)

    # Lane-dense padding: last dim is a multiple of 128 (and of TILE if gridded).
    m_pad = max(_round_up(M, _LANE), _LANE)
    use_grid = m_pad > _TILE_MAX
    if use_grid:
        m_pad = _round_up(m_pad, _TILE_MAX)

    z = jnp.zeros_like(p1)
    # Sublane-aligned packing (groups of 8 rows) -> single (2, 32, M) operand.
    left  = jnp.stack([a1, a2, a2, a1, a2, a3, z, z], axis=1)   # rows  0:8
    mid   = jnp.stack([p1, p1, p1, th, th, th, z, z], axis=1)   # rows  8:16
    right = jnp.stack([c1, c2, c3, c1, c2, c3, z, z], axis=1)   # rows 16:24
    bp    = jnp.stack([b1, b2, b3, p2, z, z, z, z], axis=1)     # rows 24:32
    packed = jnp.concatenate([left, mid, right, bp], axis=1)    # (2, 32, M)
    if m_pad != M:
        packed = jnp.pad(packed, ((0, 0), (0, 0), (0, m_pad - M)))

    ab = jnp.stack([jnp.asarray(alpha, f32), jnp.asarray(belta, f32)])  # (2,)

    if not use_grid:
        # Small/medium M: one full-array block, no per-grid-step overhead.
        diag_new = pl.pallas_call(
            theta_unfold_kernel,
            out_shape=jax.ShapeDtypeStruct((2, m_pad), f32),
            in_specs=[pl.BlockSpec(memory_space=pltpu.MemorySpace.SMEM),
                      pl.BlockSpec(memory_space=pltpu.MemorySpace.VMEM)],
            out_specs=pl.BlockSpec(memory_space=pltpu.MemorySpace.VMEM),
        )(ab, packed)
    else:
        # Large M: lane-tiled grid, auto double-buffered; "parallel" lets the
        # two TensorCores on v7x split the columns (harmless on v5e/v6e).
        n_tiles = m_pad // _TILE_MAX
        diag_new = pl.pallas_call(
            theta_unfold_kernel,
            out_shape=jax.ShapeDtypeStruct((2, m_pad), f32),
            grid=(n_tiles,),
            in_specs=[pl.BlockSpec(memory_space=pltpu.MemorySpace.SMEM),
                      pl.BlockSpec((2, 32, _TILE_MAX), lambda i: (0, 0, i))],
            out_specs=pl.BlockSpec((2, _TILE_MAX), lambda i: (0, i)),
            compiler_params=pltpu.CompilerParams(
                dimension_semantics=("parallel",)),
        )(ab, packed)

    return diag_new[:, :M]


def theta_unfold(Theta, A1, B1, C1, A2, B2, C2, A3, B3, C3,
                 alpha, belta, param1, param2):
    """Dense-matrix interface matching the PyTorch module.

    NOTE: diagonal extraction + cdiag re-embedding here move O(M^2) HBM bytes
    while the kernel only needs O(M); callers that already hold the diagonals
    should call theta_unfold_diag directly.
    """
    M = param1.shape[1]

    def diag(x):  # [2, M, M] -> [2, M]
        return jnp.diagonal(x, axis1=-2, axis2=-1)

    diag_new = theta_unfold_diag(
        diag(Theta), diag(A1), diag(B1), diag(C1),
        diag(A2), diag(B2), diag(C2),
        diag(A3), diag(B3), diag(C3),
        alpha, belta, param1, param2)

    # cdiag embedding (dense Theta_new) is plain XLA glue.
    idx = jnp.arange(M)
    return jnp.zeros((2, M, M), diag_new.dtype).at[:, idx, idx].set(diag_new)


# --------------------------- pure-JAX reference -------------------------------

def theta_unfold_ref(Theta, A1, B1, C1, A2, B2, C2, A3, B3, C3,
                     alpha, belta, param1, param2):
    def d(x):
        return jnp.diagonal(x, axis1=-2, axis2=-1)

    def cm(a, b):
        return jnp.stack([a[0] * b[0] - a[1] * b[1],
                          a[0] * b[1] + a[1] * b[0]], axis=0)

    th, a1, b1, c1 = d(Theta), d(A1), d(B1), d(C1)
    a2, b2, c2 = d(A2), d(B2), d(C2)
    a3, b3, c3 = d(A3), d(B3), d(C3)

    q1 = cm(a1, cm(param1, c1))
    q2 = cm(a2, cm(param1, c2))
    q3 = cm(a2, cm(param1, c3))   # same A2 quirk as the original module

    bb = (alpha * cm(a1, cm(th, c1)) - q1 + b1
          + belta * cm(a2, cm(th, c2)) - q2 + b2
          + belta * cm(a3, cm(th, c3)) - q3 + b3
          + param2)
    nrm = jnp.sqrt(bb[0] ** 2 + bb[1] ** 2)
    x = bb / nrm
    return jnp.stack([jnp.diag(x[0]), jnp.diag(x[1])], axis=0)


# ---------------------------------- main --------------------------------------

if __name__ == "__main__":
    M_fai = 16
    key = jax.random.PRNGKey(0)
    keys = jax.random.split(key, 16)

    # xavier_uniform_ on a (2, M_fai) tensor with gain=0.01:
    # bound = gain * sqrt(6 / (fan_in + fan_out)), fan_in=M_fai, fan_out=2.
    bound = 0.01 * math.sqrt(6.0 / (M_fai + 2))
    param1 = jax.random.uniform(keys[0], (2, M_fai), jnp.float32, -bound, bound)
    param2 = jax.random.uniform(keys[1], (2, M_fai), jnp.float32, -bound, bound)
    # param3/param4/param5 exist in __init__ but are unused in forward.

    shape = (2, M_fai, M_fai)
    Theta = jax.random.normal(keys[5], shape, jnp.float32)
    A1 = jax.random.normal(keys[6], shape, jnp.float32)
    B1 = jax.random.normal(keys[7], shape, jnp.float32)
    C1 = jax.random.normal(keys[8], shape, jnp.float32)
    A2 = jax.random.normal(keys[9], shape, jnp.float32)
    B2 = jax.random.normal(keys[10], shape, jnp.float32)
    C2 = jax.random.normal(keys[11], shape, jnp.float32)
    A3 = jax.random.normal(keys[12], shape, jnp.float32)
    B3 = jax.random.normal(keys[13], shape, jnp.float32)
    C3 = jax.random.normal(keys[14], shape, jnp.float32)
    alpha = 0.9
    belta = 0.5

    out = theta_unfold(Theta, A1, B1, C1, A2, B2, C2, A3, B3, C3,
                       alpha, belta, param1, param2)
    out = jax.block_until_ready(out)

    ref = theta_unfold_ref(Theta, A1, B1, C1, A2, B2, C2, A3, B3, C3,
                           alpha, belta, param1, param2)
    assert out.shape == (2, M_fai, M_fai)
    assert jnp.allclose(out, ref, atol=1e-5, rtol=1e-5)

    print("KERNEL_OK")
</pallas_src>

<mosaic_0001>
module attributes {stable_mosaic.version = 11 : i64} {
  func.func @theta_unfold_kernel(%arg0: memref<2xf32, #tpu.memory_space<smem>>, %arg1: memref<2x32x128xf32, #tpu.memory_space<vmem>>, %arg2: memref<2x128xf32, #tpu.memory_space<vmem>>) attributes {dimension_semantics = [], scalar_prefetch = 0 : i64, scratch_operands = 0 : i64, tpu.core_type = #tpu.core_type<tc>} {
    %c0 = arith.constant 0 : index
    %c0_0 = arith.constant 0 : index
    %c0_1 = arith.constant 0 : index
    %0 = vector.load %arg1[%c0, %c0_0, %c0_1] : memref<2x32x128xf32, #tpu.memory_space<vmem>>, vector<2x32x128xf32>
    %1 = vector.extract_strided_slice %0 {offsets = [0, 0, 0], sizes = [1, 32, 128], strides = [1, 1, 1]} : vector<2x32x128xf32> to vector<1x32x128xf32>
    %2 = vector.shape_cast %1 : vector<1x32x128xf32> to vector<32x128xf32>
    %3 = vector.extract_strided_slice %0 {offsets = [1, 0, 0], sizes = [1, 32, 128], strides = [1, 1, 1]} : vector<2x32x128xf32> to vector<1x32x128xf32>
    %4 = vector.shape_cast %3 : vector<1x32x128xf32> to vector<32x128xf32>
    %5 = vector.extract_strided_slice %2 {offsets = [0, 0], sizes = [8, 128], strides = [1, 1]} : vector<32x128xf32> to vector<8x128xf32>
    %6 = vector.extract_strided_slice %4 {offsets = [0, 0], sizes = [8, 128], strides = [1, 1]} : vector<32x128xf32> to vector<8x128xf32>
    %7 = vector.extract_strided_slice %2 {offsets = [8, 0], sizes = [8, 128], strides = [1, 1]} : vector<32x128xf32> to vector<8x128xf32>
    %8 = vector.extract_strided_slice %4 {offsets = [8, 0], sizes = [8, 128], strides = [1, 1]} : vector<32x128xf32> to vector<8x128xf32>
    %9 = vector.extract_strided_slice %2 {offsets = [16, 0], sizes = [8, 128], strides = [1, 1]} : vector<32x128xf32> to vector<8x128xf32>
    %10 = vector.extract_strided_slice %4 {offsets = [16, 0], sizes = [8, 128], strides = [1, 1]} : vector<32x128xf32> to vector<8x128xf32>
    %11 = vector.extract_strided_slice %2 {offsets = [24, 0], sizes = [8, 128], strides = [1, 1]} : vector<32x128xf32> to vector<8x128xf32>
    %12 = vector.extract_strided_slice %4 {offsets = [24, 0], sizes = [8, 128], strides = [1, 1]} : vector<32x128xf32> to vector<8x128xf32>
    %13 = arith.mulf %7, %9 : vector<8x128xf32>
    %14 = arith.mulf %8, %10 : vector<8x128xf32>
    %15 = arith.subf %13, %14 : vector<8x128xf32>
    %16 = arith.mulf %7, %10 : vector<8x128xf32>
    %17 = arith.mulf %8, %9 : vector<8x128xf32>
    %18 = arith.addf %16, %17 : vector<8x128xf32>
    %19 = arith.mulf %5, %15 : vector<8x128xf32>
    %20 = arith.mulf %6, %18 : vector<8x128xf32>
    %21 = arith.subf %19, %20 : vector<8x128xf32>
    %22 = arith.mulf %5, %18 : vector<8x128xf32>
    %23 = arith.mulf %6, %15 : vector<8x128xf32>
    %24 = arith.addf %22, %23 : vector<8x128xf32>
    %c0_2 = arith.constant 0 : index
    %25 = memref.load %arg0[%c0_2] : memref<2xf32, #tpu.memory_space<smem>>
    %c1 = arith.constant 1 : index
    %26 = memref.load %arg0[%c1] : memref<2xf32, #tpu.memory_space<smem>>
    %27 = tpu.iota {dimensions = array<i32: 0>} : vector<8x1xi32>
    %c3_i32 = arith.constant 3 : i32
    %28 = vector.broadcast %c3_i32 : i32 to vector<8x1xi32>
    %29 = arith.cmpi slt, %27, %28 : vector<8x1xi32>
    %c3_i32_3 = arith.constant 3 : i32
    %30 = vector.broadcast %c3_i32_3 : i32 to vector<8x1xi32>
    %31 = arith.cmpi eq, %27, %30 : vector<8x1xi32>
    %c6_i32 = arith.constant 6 : i32
    %32 = vector.broadcast %c6_i32 : i32 to vector<8x1xi32>
    %33 = arith.cmpi slt, %27, %32 : vector<8x1xi32>
    %cst = arith.constant 0.000000e+00 : f32
    %34 = vector.broadcast %26 : f32 to vector<8x1xf32>
    %35 = vector.broadcast %cst : f32 to vector<8x1xf32>
    %36 = arith.select %33, %34, %35 : vector<8x1xi1>, vector<8x1xf32>
    %37 = vector.broadcast %25 : f32 to vector<8x1xf32>
    %38 = arith.select %31, %37, %36 : vector<8x1xi1>, vector<8x1xf32>
    %cst_4 = arith.constant -1.000000e+00 : f32
    %39 = vector.broadcast %cst_4 : f32 to vector<8x1xf32>
    %40 = arith.select %29, %39, %38 : vector<8x1xi1>, vector<8x1xf32>
    %41 = vector.broadcast %40 : vector<8x1xf32> to vector<8x128xf32>
    %42 = arith.mulf %41, %21 : vector<8x128xf32>
    %cst_5 = arith.constant dense<0.000000e+00> : vector<128xf32>
    %43 = vector.multi_reduction <add>, %42, %cst_5 [0] : vector<8x128xf32> to vector<128xf32>
    %44 = vector.shape_cast %43 : vector<128xf32> to vector<1x128xf32>
    %cst_6 = arith.constant dense<0.000000e+00> : vector<128xf32>
    %45 = vector.multi_reduction <add>, %11, %cst_6 [0] : vector<8x128xf32> to vector<128xf32>
    %46 = vector.shape_cast %45 : vector<128xf32> to vector<1x128xf32>
    %47 = arith.addf %44, %46 : vector<1x128xf32>
    %48 = vector.broadcast %40 : vector<8x1xf32> to vector<8x128xf32>
    %49 = arith.mulf %48, %24 : vector<8x128xf32>
    %cst_7 = arith.constant dense<0.000000e+00> : vector<128xf32>
    %50 = vector.multi_reduction <add>, %49, %cst_7 [0] : vector<8x128xf32> to vector<128xf32>
    %51 = vector.shape_cast %50 : vector<128xf32> to vector<1x128xf32>
    %cst_8 = arith.constant dense<0.000000e+00> : vector<128xf32>
    %52 = vector.multi_reduction <add>, %12, %cst_8 [0] : vector<8x128xf32> to vector<128xf32>
    %53 = vector.shape_cast %52 : vector<128xf32> to vector<1x128xf32>
    %54 = arith.addf %51, %53 : vector<1x128xf32>
    %55 = arith.mulf %47, %47 : vector<1x128xf32>
    %56 = arith.mulf %54, %54 : vector<1x128xf32>
    %57 = arith.addf %55, %56 : vector<1x128xf32>
    %58 = math.rsqrt %57 : vector<1x128xf32>
    %59 = tpu.concatenate %47, %54 in 0 : vector<1x128xf32>, vector<1x128xf32> -> vector<2x128xf32>
    %60 = vector.broadcast %58 : vector<1x128xf32> to vector<2x128xf32>
    %61 = arith.mulf %59, %60 : vector<2x128xf32>
    %c0_9 = arith.constant 0 : index
    %c0_10 = arith.constant 0 : index
    %62 = vector.load %arg2[%c0_9, %c0_10] : memref<2x128xf32, #tpu.memory_space<vmem>>, vector<2x128xf32>
    tpu.vector_store %arg2[%c0_9, %c0_10], %61 {strides = array<i32>} : memref<2x128xf32, #tpu.memory_space<vmem>>, vector<2x128xf32>,
    return
  }
}

</mosaic_0001>

<llo_original>
// kernel: tpu_custom_call.1
$region0: #{tpu_custom_call.1}
  #allocation0 [shape = 'u32[]', space=smem, size = 0x4, offset = 0x4, fixed_abs, tag = 'smem constant byte address 0x4 - core index']
  #allocation1 [shape = 'u32[144,128]{1,0:T(1,128)}', space=vmem, size = 0x12000, scoped, tag = 'internal scratch']
  %s0 = inlined_call_operand.hbm [shape: f32[2], index: 0, kind: input, shape index: {}]
  %s1 = inlined_call_operand.hbm [shape: f32[2,32,128], index: 1, kind: input, shape index: {}]
  %s2 = inlined_call_operand.hbm [shape: f32[2,128], index: 2, kind: output, shape index: {}]
  %s3 = sld [smem:[#allocation0]]
  $region26: #{tpu_custom_call.1} parent=0
    _
  %s5 = ssub.s32 1, %s3
  %s6 = scalar_select 0, %s5, %s3
  $region1: #{tpu_custom_call.1} parent=0
    #allocation2 [shape = 'u8[512]{0}', space=smem, size = 0x200, scoped, tag = 'input window, operand 0, single buffered']
    #allocation3 [shape = 's32[1]{0}', space=sflag, size = 0x4, scoped, tag = 'scoped memory for tpu_custom_call.1']
    #allocation4 [shape = 's32[1]{0}', space=sflag, size = 0x4, scoped, tag = 'scoped memory for tpu_custom_call.1']
    #allocation5 [shape = 's32[1]{0}', space=sflag, size = 0x4, scoped, tag = 'scoped memory for tpu_custom_call.1']
    #allocation6 [shape = 'u8[32768]{0}', space=vmem, size = 0x8000, scoped, tag = 'input window, operand 1, single buffered']
    #allocation7 [shape = 'u8[1024]{0}', space=vmem, size = 0x400, scoped, tag = 'output window, operand 0, single buffered']
    %7 = vsyncpa [#allocation5], 0
    %8 = vsyncpa [#allocation3], 0
    %9 = vsyncpa [#allocation4], 0
    // Predicated region
    $region2: #{tpu_custom_call.1} parent=1 // pred_check
      _
    $region3: #{tpu_custom_call.1} parent=1 // pred_check_branch
      %11 = sbr.rel (0) target = $region5
    $region4: #{tpu_custom_call.1} parent=1 // pred_region
      %s13 = ssub.s32 16, 16
      %14 = vsyncadd [#allocation5], %s13
      %17 = dma.hbm_to_smem %s0, 16, [#allocation2], [#allocation5]
    $region5: #{tpu_custom_call.1} parent=1 // pred_fallthru
      _
    // Predicated region
    $region6: #{tpu_custom_call.1} parent=1 // pred_check
      _
    $region7: #{tpu_custom_call.1} parent=1 // pred_check_branch
      %19 = sbr.rel (0) target = $region9
    $region8: #{tpu_custom_call.1} parent=1 // pred_region
      %s21 = ssub.s32 1024, 1024
      %22 = vsyncadd [#allocation3], %s21
      %s23 = sshll.u32 [#allocation6], 4
      %s24 = int_to_ptr.vmem [resolvable:$true] %s23
      %29 = dma.hbm_to_vmem [thread:$0]  %s1, 1024, %s24, [#allocation3], 128, 128, 8
    $region9: #{tpu_custom_call.1} parent=1 // pred_fallthru
      _
    // Predicated region
    $region10: #{tpu_custom_call.1} parent=1 // pred_check
      _
    $region11: #{tpu_custom_call.1} parent=1 // pred_check_branch
      %31 = sbr.rel (0) target = $region13
    $region12: #{tpu_custom_call.1} parent=1 // pred_region
      %32 = dma.done [#allocation5], 16
    $region13: #{tpu_custom_call.1} parent=1 // pred_fallthru
      _
    // Predicated region
    $region14: #{tpu_custom_call.1} parent=1 // pred_check
      _
    $region15: #{tpu_custom_call.1} parent=1 // pred_check_branch
      %34 = sbr.rel (0) target = $region17
    $region16: #{tpu_custom_call.1} parent=1 // pred_region
      %35 = dma.done [#allocation3], 1024
    $region17: #{tpu_custom_call.1} parent=1 // pred_fallthru
      _
    %36 = sfence
    %v37 = vld [vmem:[#allocation6] sm:$0xff]
    %v38 = vld [vmem:[#allocation6 + $0x8] sm:$0xff]
    %v39 = vld [vmem:[#allocation6 + $0x10] sm:$0xff]
    %v40 = vld [vmem:[#allocation6 + $0x18] sm:$0xff]
    %v41 = vld [vmem:[#allocation6 + $0x20] sm:$0xff]
    %v42 = vld [vmem:[#allocation6 + $0x28] sm:$0xff]
    %v43 = vld [vmem:[#allocation6 + $0x30] sm:$0xff]
    %v44 = vld [vmem:[#allocation6 + $0x38] sm:$0xff]
    %v45 = vmul.f32 %v38, %v39
    %v46 = vmul.f32 %v42, %v43
    %v47 = vsub.f32 %v45, %v46
    %v48 = vmul.f32 %v38, %v43
    %v49 = vmul.f32 %v42, %v39
    %v50 = vadd.f32 %v48, %v49
    %v51 = vmul.f32 %v37, %v47
    %v52 = vmul.f32 %v41, %v50
    %v53 = vsub.f32 %v51, %v52
    %v54 = vmul.f32 %v37, %v50
    %v55 = vmul.f32 %v41, %v47
    %v56 = vadd.f32 %v54, %v55
    %s57 = sld [smem:[#allocation2]]
    %s58 = sld [smem:[#allocation2 + $0x1]]
    %v59 = vlaneseq
    %v60 = vshrl.u32 %v59, 7
    %vm61 = vcmp.lt.s32.totalorder %v60, 3
    %vm62 = vcmp.eq.s32.totalorder %v60, 3
    %vm63 = vcmp.lt.s32.totalorder %v60, 6
    %v64 = vstv %s58
    %v65 = vsel %vm63, %v64, 0.0
    %v66 = vstv %s57
    %v67 = vsel %vm62, %v66, %v65
    %v68 = vsel %vm61, -1.0, %v67
    %v69 = vmul.f32 %v68, %v53
    %v70 = vrot.slane %v69, 4
    %v71 = vadd.f32 %v69, %v70
    %v72 = vrot.slane %v71, 2
    %v73 = vadd.f32 %v71, %v72
    %v74 = vrot.slane %v73, 1
    %v75 = vadd.f32 %v73, %v74
    %v76 = vrot.slane %v40, 4
    %v77 = vadd.f32 %v40, %v76
    %v78 = vrot.slane %v77, 2
    %v79 = vadd.f32 %v77, %v78
    %v80 = vrot.slane %v79, 1
    %v81 = vadd.f32 %v79, %v80
    %v82 = vadd.f32 %v75, %v81
    %v83 = vmul.f32 %v68, %v56
    %v84 = vrot.slane %v83, 4
    %v85 = vadd.f32 %v83, %v84
    %v86 = vrot.slane %v85, 2
    %v87 = vadd.f32 %v85, %v86
    %v88 = vrot.slane %v87, 1
    %v89 = vadd.f32 %v87, %v88
    %v90 = vrot.slane %v44, 4
    %v91 = vadd.f32 %v44, %v90
    %v92 = vrot.slane %v91, 2
    %v93 = vadd.f32 %v91, %v92
    %v94 = vrot.slane %v93, 1
    %v95 = vadd.f32 %v93, %v94
    %v96 = vadd.f32 %v89, %v95
    %v97 = vmul.f32 %v82, %v82
    %v98 = vmul.f32 %v96, %v96
    %v99 = vadd.f32 %v97, %v98
    %v100 = vrsqrt.pop %v99
    %vm101 = vcmask 1040384
    %v102 = vsel %vm101, %v82, %v96
    %v103 = vmul.f32 %v102, %v100
    %104 = vst [vmem:[#allocation7] sm:$0x3] %v103
    // Predicated region
    $region18: #{tpu_custom_call.1} parent=1 // pred_check
      _
    $region19: #{tpu_custom_call.1} parent=1 // pred_check_branch
      %106 = sbr.rel (0) target = $region21
    $region20: #{tpu_custom_call.1} parent=1 // pred_region
      %s108 = ssub.s32 32, 32
      %109 = vsyncadd [#allocation4], %s108
      %s111 = sshll.u32 [#allocation7], 4
      %s112 = int_to_ptr.vmem [resolvable:$true] %s111
      %114 = dma.vmem_to_hbm [thread:$0]  %s112, 32, %s2, [#allocation4]
    $region21: #{tpu_custom_call.1} parent=1 // pred_fallthru
      _
    // Predicated region
    $region22: #{tpu_custom_call.1} parent=1 // pred_check
      _
    $region23: #{tpu_custom_call.1} parent=1 // pred_check_branch
      %116 = sbr.rel (0) target = $region25
    $region24: #{tpu_custom_call.1} parent=1 // pred_region
      %117 = dma.done [#allocation4], 32
    $region25: #{tpu_custom_call.1} parent=1 // pred_fallthru
      _
    %118 = vsyncpa [#allocation3], 1
    %119 = vsyncpa [#allocation4], 1
    %120 = vsyncpa [#allocation5], 1

</llo_original>
